<compile_context>
chip_gen: v5e
topology: v5e:2x2
jax: 0.10.0
libtpu: 0.0.40
codegen_flags: <defaults>
</compile_context>

<pallas_src>
import functools

import jax
import jax.numpy as jnp
from jax.experimental import pallas as pl
from jax.experimental.pallas import tpu as pltpu  # noqa: F401  (TPU backend)

HIDDEN = 128   # fc1 output channels (fixed by the module)
CPAD = 128     # class dim padded to one full lane tile
BN_EPS = 1e-5  # nn.BatchNorm2d default


def _fused_mlp_bn_softmax_kernel(x_ref, w1_ref, w2_ref, p_ref, o_ref, *,
                                 num_classes):
    # x_ref: (B, Din) f32   w1_ref: (Din, H) f32   w2_ref: (H, CPAD) f32
    # p_ref: (8, 128) f32 packed rows [b1; gamma; beta; b2_pad; zeros...]
    # o_ref: (B, CPAD) f32
    p = p_ref[...]
    b1 = p[0:1, :]
    gamma = p[1:2, :]
    beta = p[2:3, :]
    b2 = p[3:4, :]

    # fc1 + ReLU  (MXU matmul, f32 accumulation)
    h = jnp.dot(x_ref[...], w1_ref[...],
                preferred_element_type=jnp.float32) + b1
    h = jnp.maximum(h, 0.0)

    # BatchNorm2d(128) with H=W=1 == per-channel normalization over the batch
    # axis with training-mode batch statistics (biased variance), folded into
    # a single FMA over the (B, H) tile.
    # TODO(synk): eval-mode BatchNorm (running_mean/running_var) not modelled.
    inv_b = 1.0 / h.shape[0]
    mean = jnp.sum(h, axis=0, keepdims=True) * inv_b            # (1, H)
    mean_sq = jnp.sum(h * h, axis=0, keepdims=True) * inv_b     # (1, H)
    var = mean_sq - mean * mean                                 # biased var
    scale = gamma * jax.lax.rsqrt(var + BN_EPS)                 # (1, H)
    shift = beta - mean * scale                                 # (1, H)
    h = h * scale + shift                                       # one FMA

    # fc2 (f32 MXU matmul, lane-dense padded class dim)
    logits = jnp.dot(h, w2_ref[...],
                     preferred_element_type=jnp.float32) + b2   # (B, CPAD)

    # Softmax over the class axis. Padded lanes never win the max and are
    # explicitly zeroed in exp-space, so the denominator is exactly the sum
    # over the real classes; normalization uses an exact f32 divide.
    lane = jax.lax.broadcasted_iota(jnp.int32, logits.shape, 1)
    valid = lane < num_classes
    logits = jnp.where(valid, logits, -1e30)
    m = jnp.max(logits, axis=1, keepdims=True)
    e = jnp.where(valid, jnp.exp(logits - m), 0.0)
    denom = jnp.sum(e, axis=1, keepdims=True)
    o_ref[...] = (e * (1.0 / denom)).astype(o_ref.dtype)


@jax.jit
def custom_model_forward(x, w1, b1, gamma, beta, w2, b2):
    B, din = x.shape
    H, C = w2.shape
    assert H == HIDDEN and C <= CPAD

    x = x.astype(jnp.float32)
    w1 = w1.astype(jnp.float32)
    # Pad the class dimension of fc2 weights to a full 128-lane tile.
    w2_pad = jnp.zeros((H, CPAD), jnp.float32).at[:, :C].set(
        w2.astype(jnp.float32))

    # Pack the four small per-channel vectors into one (8, 128) f32 tile:
    # one DMA + one padded VMEM tile instead of four.
    params = jnp.zeros((8, CPAD), jnp.float32)
    params = params.at[0, :H].set(b1.reshape(-1))
    params = params.at[1, :H].set(gamma.reshape(-1))
    params = params.at[2, :H].set(beta.reshape(-1))
    params = params.at[3, :C].set(b2.reshape(-1))

    full = lambda shape: pl.BlockSpec(shape, lambda: tuple(0 for _ in shape))
    cost = pl.CostEstimate(
        flops=2 * B * (din * H + H * CPAD),
        transcendentals=B * CPAD + H,                     # exp + rsqrt
        bytes_accessed=4 * (x.size + w1.size + w2_pad.size + params.size
                            + B * CPAD),
    )

    out = pl.pallas_call(
        functools.partial(_fused_mlp_bn_softmax_kernel, num_classes=C),
        out_shape=jax.ShapeDtypeStruct((B, CPAD), jnp.float32),
        in_specs=[
            full(x.shape),
            full(w1.shape),
            full(w2_pad.shape),
            full(params.shape),
        ],
        out_specs=full((B, CPAD)),
        cost_estimate=cost,
    )(x, w1, w2_pad, params)
    return out[:, :C]


def reference_forward(x, w1, b1, gamma, beta, w2, b2):
    """Pure-JAX reference of the PyTorch forward (training-mode BN)."""
    h = jnp.maximum(x @ w1 + b1, 0.0)
    mean = jnp.mean(h, axis=0, keepdims=True)
    var = jnp.mean(jnp.square(h - mean), axis=0, keepdims=True)   # biased
    h = (h - mean) * jax.lax.rsqrt(var + BN_EPS) * gamma + beta
    return jax.nn.softmax(h @ w2 + b2, axis=1)


def make_params(key, input_dim, hidden, num_classes):
    k1, k2, k3, k4 = jax.random.split(key, 4)
    # Deterministic "PyTorch-style" uniform init bounds (synthetic weights).
    bound1 = 1.0 / (input_dim ** 0.5)
    bound2 = 1.0 / (hidden ** 0.5)
    w1 = jax.random.uniform(k1, (input_dim, hidden), jnp.float32, -bound1, bound1)
    b1 = jax.random.uniform(k2, (hidden,), jnp.float32, -bound1, bound1)
    w2 = jax.random.uniform(k3, (hidden, num_classes), jnp.float32, -bound2, bound2)
    b2 = jax.random.uniform(k4, (num_classes,), jnp.float32, -bound2, bound2)
    gamma = jnp.ones((hidden,), jnp.float32)   # BatchNorm2d weight init
    beta = jnp.zeros((hidden,), jnp.float32)   # BatchNorm2d bias init
    return w1, b1, gamma, beta, w2, b2


if __name__ == "__main__":
    # Shapes from the module spec: x is (num_timesteps_input=168, num_nodes=30),
    # fc1: 30 -> 128, fc2: 128 -> num_classes. The full 168-row batch is
    # processed in a single pallas_call (168 is a multiple of 8).
    B = 168
    INPUT_DIM = 30
    NUM_CLASSES = 10

    key = jax.random.PRNGKey(0)
    kx, kp = jax.random.split(key)
    x = jax.random.uniform(kx, (B, INPUT_DIM), jnp.float32)
    w1, b1, gamma, beta, w2, b2 = make_params(kp, INPUT_DIM, HIDDEN, NUM_CLASSES)

    out = custom_model_forward(x, w1, b1, gamma, beta, w2, b2)
    out = jax.block_until_ready(out)

    # Sanity: correct shape, finite, softmax rows sum to 1, matches reference.
    assert out.shape == (B, NUM_CLASSES)
    assert bool(jnp.all(jnp.isfinite(out)))
    row_sums = jnp.sum(out, axis=1)
    assert bool(jnp.all(jnp.abs(row_sums - 1.0) < 1e-3))
    ref = reference_forward(x, w1, b1, gamma, beta, w2, b2)
    assert bool(jnp.max(jnp.abs(out - ref)) < 5e-3)
    print("KERNEL_OK")
</pallas_src>

<mosaic_0001>
module attributes {stable_mosaic.version = 11 : i64} {
  func.func @_fused_mlp_bn_softmax_kernel(%arg0: memref<168x30xf32, #tpu.memory_space<vmem>>, %arg1: memref<30x128xf32, #tpu.memory_space<vmem>>, %arg2: memref<128x128xf32, #tpu.memory_space<vmem>>, %arg3: memref<8x128xf32, #tpu.memory_space<vmem>>, %arg4: memref<168x128xf32, #tpu.memory_space<vmem>>) attributes {dimension_semantics = [], scalar_prefetch = 0 : i64, scratch_operands = 0 : i64, tpu.core_type = #tpu.core_type<tc>} {
    %c0 = arith.constant 0 : index
    %c0_0 = arith.constant 0 : index
    %0 = vector.load %arg3[%c0, %c0_0] : memref<8x128xf32, #tpu.memory_space<vmem>>, vector<8x128xf32>
    %1 = vector.extract_strided_slice %0 {offsets = [0, 0], sizes = [1, 128], strides = [1, 1]} : vector<8x128xf32> to vector<1x128xf32>
    %2 = vector.extract_strided_slice %0 {offsets = [1, 0], sizes = [1, 128], strides = [1, 1]} : vector<8x128xf32> to vector<1x128xf32>
    %3 = vector.extract_strided_slice %0 {offsets = [2, 0], sizes = [1, 128], strides = [1, 1]} : vector<8x128xf32> to vector<1x128xf32>
    %4 = vector.extract_strided_slice %0 {offsets = [3, 0], sizes = [1, 128], strides = [1, 1]} : vector<8x128xf32> to vector<1x128xf32>
    %c0_1 = arith.constant 0 : index
    %c0_2 = arith.constant 0 : index
    %5 = vector.load %arg0[%c0_1, %c0_2] : memref<168x30xf32, #tpu.memory_space<vmem>>, vector<168x30xf32>
    %c0_3 = arith.constant 0 : index
    %c0_4 = arith.constant 0 : index
    %6 = vector.load %arg1[%c0_3, %c0_4] : memref<30x128xf32, #tpu.memory_space<vmem>>, vector<30x128xf32>
    %cst = arith.constant dense<0.000000e+00> : vector<168x128xf32>
    %7 = tpu.matmul %5, %6, %cst {dimension_numbers = #tpu.dot_dimension_numbers<[1], [0], [0], [1], [0, 0, 1, 1], [], []>} : vector<168x30xf32>, vector<30x128xf32>, vector<168x128xf32> -> vector<168x128xf32>
    %8 = vector.broadcast %1 : vector<1x128xf32> to vector<168x128xf32>
    %9 = arith.addf %7, %8 : vector<168x128xf32>
    %cst_5 = arith.constant 0.000000e+00 : f32
    %10 = vector.broadcast %cst_5 : f32 to vector<168x128xf32>
    %11 = arith.maximumf %9, %10 : vector<168x128xf32>
    %cst_6 = arith.constant dense<0.000000e+00> : vector<128xf32>
    %12 = vector.multi_reduction <add>, %11, %cst_6 [0] : vector<168x128xf32> to vector<128xf32>
    %13 = vector.shape_cast %12 : vector<128xf32> to vector<1x128xf32>
    %cst_7 = arith.constant 0.00595238106 : f32
    %14 = vector.broadcast %cst_7 : f32 to vector<1x128xf32>
    %15 = arith.mulf %13, %14 : vector<1x128xf32>
    %16 = arith.mulf %11, %11 : vector<168x128xf32>
    %cst_8 = arith.constant dense<0.000000e+00> : vector<128xf32>
    %17 = vector.multi_reduction <add>, %16, %cst_8 [0] : vector<168x128xf32> to vector<128xf32>
    %18 = vector.shape_cast %17 : vector<128xf32> to vector<1x128xf32>
    %cst_9 = arith.constant 0.00595238106 : f32
    %19 = vector.broadcast %cst_9 : f32 to vector<1x128xf32>
    %20 = arith.mulf %18, %19 : vector<1x128xf32>
    %21 = arith.mulf %15, %15 : vector<1x128xf32>
    %22 = arith.subf %20, %21 : vector<1x128xf32>
    %cst_10 = arith.constant 9.99999974E-6 : f32
    %23 = vector.broadcast %cst_10 : f32 to vector<1x128xf32>
    %24 = arith.addf %22, %23 : vector<1x128xf32>
    %25 = math.rsqrt %24 : vector<1x128xf32>
    %26 = arith.mulf %2, %25 : vector<1x128xf32>
    %27 = arith.mulf %15, %26 : vector<1x128xf32>
    %28 = arith.subf %3, %27 : vector<1x128xf32>
    %29 = vector.broadcast %26 : vector<1x128xf32> to vector<168x128xf32>
    %30 = arith.mulf %11, %29 : vector<168x128xf32>
    %31 = vector.broadcast %28 : vector<1x128xf32> to vector<168x128xf32>
    %32 = arith.addf %30, %31 : vector<168x128xf32>
    %c0_11 = arith.constant 0 : index
    %c0_12 = arith.constant 0 : index
    %33 = vector.load %arg2[%c0_11, %c0_12] : memref<128x128xf32, #tpu.memory_space<vmem>>, vector<128x128xf32>
    %cst_13 = arith.constant dense<0.000000e+00> : vector<168x128xf32>
    %34 = tpu.matmul %32, %33, %cst_13 {dimension_numbers = #tpu.dot_dimension_numbers<[1], [0], [0], [1], [0, 0, 1, 1], [], []>} : vector<168x128xf32>, vector<128x128xf32>, vector<168x128xf32> -> vector<168x128xf32>
    %35 = vector.broadcast %4 : vector<1x128xf32> to vector<168x128xf32>
    %36 = arith.addf %34, %35 : vector<168x128xf32>
    %37 = tpu.iota {dimensions = array<i32: 1>} : vector<168x128xi32>
    %c10_i32 = arith.constant 10 : i32
    %38 = vector.broadcast %c10_i32 : i32 to vector<168x128xi32>
    %39 = arith.cmpi slt, %37, %38 : vector<168x128xi32>
    %cst_14 = arith.constant -1.000000e+30 : f32
    %40 = vector.broadcast %cst_14 : f32 to vector<168x128xf32>
    %41 = arith.select %39, %36, %40 : vector<168x128xi1>, vector<168x128xf32>
    %cst_15 = arith.constant dense<0xFF800000> : vector<168xf32>
    %42 = vector.multi_reduction <maximumf>, %41, %cst_15 [1] : vector<168x128xf32> to vector<168xf32>
    %43 = vector.shape_cast %42 : vector<168xf32> to vector<168x1xf32>
    %44 = vector.broadcast %43 : vector<168x1xf32> to vector<168x128xf32>
    %45 = arith.subf %41, %44 : vector<168x128xf32>
    %46 = math.exp %45 : vector<168x128xf32>
    %cst_16 = arith.constant 0.000000e+00 : f32
    %47 = vector.broadcast %cst_16 : f32 to vector<168x128xf32>
    %48 = arith.select %39, %46, %47 : vector<168x128xi1>, vector<168x128xf32>
    %cst_17 = arith.constant dense<0.000000e+00> : vector<168xf32>
    %49 = vector.multi_reduction <add>, %48, %cst_17 [1] : vector<168x128xf32> to vector<168xf32>
    %50 = vector.shape_cast %49 : vector<168xf32> to vector<168x1xf32>
    %cst_18 = arith.constant 1.000000e+00 : f32
    %51 = vector.broadcast %cst_18 : f32 to vector<168x1xf32>
    %52 = arith.divf %51, %50 : vector<168x1xf32>
    %53 = vector.broadcast %52 : vector<168x1xf32> to vector<168x128xf32>
    %54 = arith.mulf %48, %53 : vector<168x128xf32>
    %c0_19 = arith.constant 0 : index
    %c0_20 = arith.constant 0 : index
    %55 = vector.load %arg4[%c0_19, %c0_20] : memref<168x128xf32, #tpu.memory_space<vmem>>, vector<168x128xf32>
    tpu.vector_store %arg4[%c0_19, %c0_20], %54 {strides = array<i32>} : memref<168x128xf32, #tpu.memory_space<vmem>>, vector<168x128xf32>,
    return
  }
}

</mosaic_0001>

<llo_original>
// kernel: custom_model_forward.1
$region0: #{custom_model_forward.1}
  #allocation0 [shape = 'u32[]', space=smem, size = 0x4, offset = 0x4, fixed_abs, tag = 'smem constant byte address 0x4 - core index']
  #allocation1 [shape = 'u32[72,128]{1,0:T(1,128)}', space=vmem, size = 0x9000, scoped, tag = 'internal scratch']
  %s0 = inlined_call_operand.vmem [shape: f32[168,30], index: 0, kind: input, shape index: {}]
  %s1 = inlined_call_operand.vmem [shape: f32[30,128], index: 1, kind: input, shape index: {}]
  %s2 = inlined_call_operand.vmem [shape: f32[128,128], index: 2, kind: input, shape index: {}]
  %s3 = inlined_call_operand.vmem [shape: f32[8,128], index: 3, kind: input, shape index: {}]
  %s4 = inlined_call_operand.vmem [shape: f32[168,128], index: 4, kind: output, shape index: {}]
  %s5 = sld [smem:[#allocation0]]
  $region26: #{custom_model_forward.1} parent=0
    _
  %s7 = ssub.s32 1, %s5
  %s8 = scalar_select 0, %s7, %s5
  // Predicated region
  $region2: #{custom_model_forward.1} parent=0 // pred_check
    _
  $region3: #{custom_model_forward.1} parent=0 // pred_check_branch
    %10 = sbr.rel (0) target = $region5
  $region4: #{custom_model_forward.1} parent=0 // pred_region
    _
  $region5: #{custom_model_forward.1} parent=0 // pred_fallthru
    _
  // Predicated region
  $region6: #{custom_model_forward.1} parent=0 // pred_check
    _
  $region7: #{custom_model_forward.1} parent=0 // pred_check_branch
    %12 = sbr.rel (0) target = $region9
  $region8: #{custom_model_forward.1} parent=0 // pred_region
    _
  $region9: #{custom_model_forward.1} parent=0 // pred_fallthru
    _
  // Predicated region
  $region10: #{custom_model_forward.1} parent=0 // pred_check
    _
  $region11: #{custom_model_forward.1} parent=0 // pred_check_branch
    %14 = sbr.rel (0) target = $region13
  $region12: #{custom_model_forward.1} parent=0 // pred_region
    _
  $region13: #{custom_model_forward.1} parent=0 // pred_fallthru
    _
  // Predicated region
  $region14: #{custom_model_forward.1} parent=0 // pred_check
    _
  $region15: #{custom_model_forward.1} parent=0 // pred_check_branch
    %16 = sbr.rel (0) target = $region17
  $region16: #{custom_model_forward.1} parent=0 // pred_region
    _
  $region17: #{custom_model_forward.1} parent=0 // pred_fallthru
    _
  %v17 = vld [vmem:[%s3] sm:$0xff]
  %v18 = vld [vmem:[%s0] sm:$0xff]
  %v19 = vld [vmem:[%s0 + $0x8] sm:$0xff]
  %v20 = vld [vmem:[%s0 + $0x10] sm:$0xff]
  %v21 = vld [vmem:[%s0 + $0x18] sm:$0xff]
  %v22 = vld [vmem:[%s0 + $0x20] sm:$0xff]
  %v23 = vld [vmem:[%s0 + $0x28] sm:$0xff]
  %v24 = vld [vmem:[%s0 + $0x30] sm:$0xff]
  %v25 = vld [vmem:[%s0 + $0x38] sm:$0xff]
  %v26 = vld [vmem:[%s0 + $0x40] sm:$0xff]
  %v27 = vld [vmem:[%s0 + $0x48] sm:$0xff]
  %v28 = vld [vmem:[%s0 + $0x50] sm:$0xff]
  %v29 = vld [vmem:[%s0 + $0x58] sm:$0xff]
  %v30 = vld [vmem:[%s0 + $0x60] sm:$0xff]
  %v31 = vld [vmem:[%s0 + $0x68] sm:$0xff]
  %v32 = vld [vmem:[%s0 + $0x70] sm:$0xff]
  %v33 = vld [vmem:[%s0 + $0x78] sm:$0xff]
  %v34 = vld [vmem:[%s0 + $0x80] sm:$0xff]
  %v35 = vld [vmem:[%s0 + $0x88] sm:$0xff]
  %v36 = vld [vmem:[%s0 + $0x90] sm:$0xff]
  %v37 = vld [vmem:[%s0 + $0x98] sm:$0xff]
  %v38 = vld [vmem:[%s0 + $0xa0] sm:$0xff]
  %v39 = vld [vmem:[%s1] sm:$0xff]
  %v40 = vld [vmem:[%s1 + $0x8] sm:$0xff]
  %v41 = vld [vmem:[%s1 + $0x10] sm:$0xff]
  %v42 = vld [vmem:[%s1 + $0x18] sm:$0x3f]
  %v43 = vperm.slane %v17, 0
  %vm44 = vcmask 244736
  %v46 = vsel %vm44, %v18, 0
  %v49 = vsel %vm44, %v19, 0
  %v52 = vsel %vm44, %v20, 0
  %v55 = vsel %vm44, %v21, 0
  %v58 = vsel %vm44, %v22, 0
  %v61 = vsel %vm44, %v23, 0
  %v64 = vsel %vm44, %v24, 0
  %v67 = vsel %vm44, %v25, 0
  %v70 = vsel %vm44, %v26, 0
  %v73 = vsel %vm44, %v27, 0
  %v76 = vsel %vm44, %v28, 0
  %v79 = vsel %vm44, %v29, 0
  %v82 = vsel %vm44, %v30, 0
  %v85 = vsel %vm44, %v31, 0
  %v88 = vsel %vm44, %v32, 0
  %v91 = vsel %vm44, %v33, 0
  %v94 = vsel %vm44, %v34, 0
  %v97 = vsel %vm44, %v35, 0
  %v100 = vsel %vm44, %v36, 0
  %v103 = vsel %vm44, %v37, 0
  %v106 = vsel %vm44, %v38, 0
  %vm108 = vcmask 1045504
  %v110 = vsel %vm108, %v42, 0
  %112 = vmatpush.msra.mxu0 0.0
  %113 = vmatpush.msra.mxu0 0.0
  %114 = vmatpush.msra.mxu0 0.0
  %115 = vmatpush.msra.mxu0 0.0
  %116 = vmatpush.msra.mxu0 0.0
  %117 = vmatpush.msra.mxu0 0.0
  %118 = vmatpush.msra.mxu0 0.0
  %119 = vmatpush.msra.mxu0 0.0
  %120 = vmatpush.msra.mxu0 0.0
  %121 = vmatpush.msra.mxu0 0.0
  %122 = vmatpush.msra.mxu0 0.0
  %123 = vmatpush.msra.mxu0 0.0
  %124 = vmatpush.msra.mxu0 %v110
  %125 = vmatpush.msra.mxu0 %v41
  %126 = vmatpush.msra.mxu0 %v40
  %127 = vmatpush.msra.mxu0 %v39
  %128 = vmatmul.f32.gmra.mxu0 %v46
  %v129 = vpop.f32.mrf.mxu0
  %v130 = vadd.f32 %v43, %v129
  %131 = vmatmul.f32.gmra.mxu0 %v49
  %v132 = vpop.f32.mrf.mxu0
  %v133 = vadd.f32 %v43, %v132
  %134 = vmatmul.f32.gmra.mxu0 %v52
  %v135 = vpop.f32.mrf.mxu0
  %v136 = vadd.f32 %v43, %v135
  %137 = vmatmul.f32.gmra.mxu0 %v55
  %v138 = vpop.f32.mrf.mxu0
  %v139 = vadd.f32 %v43, %v138
  %140 = vmatmul.f32.gmra.mxu0 %v58
  %v141 = vpop.f32.mrf.mxu0
  %v142 = vadd.f32 %v43, %v141
  %143 = vmatmul.f32.gmra.mxu0 %v61
  %v144 = vpop.f32.mrf.mxu0
  %v145 = vadd.f32 %v43, %v144
  %146 = vmatmul.f32.gmra.mxu0 %v64
  %v147 = vpop.f32.mrf.mxu0
  %v148 = vadd.f32 %v43, %v147
  %149 = vmatmul.f32.gmra.mxu0 %v67
  %v150 = vpop.f32.mrf.mxu0
  %v151 = vadd.f32 %v43, %v150
  %152 = vmatmul.f32.gmra.mxu0 %v70
  %v153 = vpop.f32.mrf.mxu0
  %v154 = vadd.f32 %v43, %v153
  %155 = vmatmul.f32.gmra.mxu0 %v73
  %v156 = vpop.f32.mrf.mxu0
  %v157 = vadd.f32 %v43, %v156
  %158 = vmatmul.f32.gmra.mxu0 %v76
  %v159 = vpop.f32.mrf.mxu0
  %v160 = vadd.f32 %v43, %v159
  %161 = vmatmul.f32.gmra.mxu0 %v79
  %v162 = vpop.f32.mrf.mxu0
  %v163 = vadd.f32 %v43, %v162
  %164 = vmatmul.f32.gmra.mxu0 %v82
  %v165 = vpop.f32.mrf.mxu0
  %v166 = vadd.f32 %v43, %v165
  %167 = vmatmul.f32.gmra.mxu0 %v85
  %v168 = vpop.f32.mrf.mxu0
  %v169 = vadd.f32 %v43, %v168
  %170 = vmatmul.f32.gmra.mxu0 %v88
  %v171 = vpop.f32.mrf.mxu0
  %v172 = vadd.f32 %v43, %v171
  %173 = vmatmul.f32.gmra.mxu0 %v91
  %v174 = vpop.f32.mrf.mxu0
  %v175 = vadd.f32 %v43, %v174
  %176 = vmatmul.f32.gmra.mxu0 %v94
  %v177 = vpop.f32.mrf.mxu0
  %v178 = vadd.f32 %v43, %v177
  %179 = vmatmul.f32.gmra.mxu0 %v97
  %v180 = vpop.f32.mrf.mxu0
  %v181 = vadd.f32 %v43, %v180
  %182 = vmatmul.f32.gmra.mxu0 %v100
  %v183 = vpop.f32.mrf.mxu0
  %v184 = vadd.f32 %v43, %v183
  %185 = vmatmul.f32.gmra.mxu0 %v103
  %v186 = vpop.f32.mrf.mxu0
  %v187 = vadd.f32 %v43, %v186
  %188 = vmatmul.f32.gmra.mxu0 %v106
  %v189 = vpop.f32.mrf.mxu0
  %v190 = vadd.f32 %v43, %v189
  %191 = vdwg.mxu0
  %v192 = vmax.f32 %v130, 0.0
  %v193 = vmax.f32 %v133, 0.0
  %v194 = vmax.f32 %v136, 0.0
  %v195 = vmax.f32 %v139, 0.0
  %v196 = vmax.f32 %v142, 0.0
  %v197 = vmax.f32 %v145, 0.0
  %v198 = vmax.f32 %v148, 0.0
  %v199 = vmax.f32 %v151, 0.0
  %v200 = vmax.f32 %v154, 0.0
  %v201 = vmax.f32 %v157, 0.0
  %v202 = vmax.f32 %v160, 0.0
  %v203 = vmax.f32 %v163, 0.0
  %v204 = vmax.f32 %v166, 0.0
  %v205 = vmax.f32 %v169, 0.0
  %v206 = vmax.f32 %v172, 0.0
  %v207 = vmax.f32 %v175, 0.0
  %v208 = vmax.f32 %v178, 0.0
  %v209 = vmax.f32 %v181, 0.0
  %v210 = vmax.f32 %v184, 0.0
  %v211 = vmax.f32 %v187, 0.0
  %v212 = vmax.f32 %v190, 0.0
  %v213 = vadd.f32 %v192, %v193
  %v214 = vadd.f32 %v213, %v194
  %v215 = vadd.f32 %v214, %v195
  %v216 = vadd.f32 %v215, %v196
  %v217 = vadd.f32 %v216, %v197
  %v218 = vadd.f32 %v217, %v198
  %v219 = vadd.f32 %v218, %v199
  %v220 = vadd.f32 %v219, %v200
  %v221 = vadd.f32 %v220, %v201
  %v222 = vadd.f32 %v221, %v202
  %v223 = vadd.f32 %v222, %v203
  %v224 = vadd.f32 %v223, %v204
  %v225 = vadd.f32 %v224, %v205
  %v226 = vadd.f32 %v225, %v206
  %v227 = vadd.f32 %v226, %v207
  %v228 = vadd.f32 %v227, %v208
  %v229 = vadd.f32 %v228, %v209
  %v230 = vadd.f32 %v229, %v210
  %v231 = vadd.f32 %v230, %v211
  %v232 = vadd.f32 %v231, %v212
  %v233 = vrot.slane %v232, 4
  %v234 = vadd.f32 %v232, %v233
  %v235 = vrot.slane %v234, 2
  %v236 = vadd.f32 %v234, %v235
  %v237 = vrot.slane %v236, 1
  %v238 = vadd.f32 %v236, %v237
  %v239 = vmul.f32 %v238, 0.005952381
  %v240 = vmul.f32 %v192, %v192
  %v241 = vmul.f32 %v193, %v193
  %v242 = vmul.f32 %v194, %v194
  %v243 = vmul.f32 %v195, %v195
  %v244 = vmul.f32 %v196, %v196
  %v245 = vmul.f32 %v197, %v197
  %v246 = vmul.f32 %v198, %v198
  %v247 = vmul.f32 %v199, %v199
  %v248 = vmul.f32 %v200, %v200
  %v249 = vmul.f32 %v201, %v201
  %v250 = vmul.f32 %v202, %v202
  %v251 = vmul.f32 %v203, %v203
  %v252 = vmul.f32 %v204, %v204
  %v253 = vmul.f32 %v205, %v205
  %v254 = vmul.f32 %v206, %v206
  %v255 = vmul.f32 %v207, %v207
  %v256 = vmul.f32 %v208, %v208
  %v257 = vmul.f32 %v209, %v209
  %v258 = vmul.f32 %v210, %v210
  %v259 = vmul.f32 %v211, %v211
  %v260 = vmul.f32 %v212, %v212
  %v261 = vadd.f32 %v240, %v241
  %v262 = vadd.f32 %v261, %v242
  %v263 = vadd.f32 %v262, %v243
  %v264 = vadd.f32 %v263, %v244
  %v265 = vadd.f32 %v264, %v245
  %v266 = vadd.f32 %v265, %v246
  %v267 = vadd.f32 %v266, %v247
  %v268 = vadd.f32 %v267, %v248
  %v269 = vadd.f32 %v268, %v249
  %v270 = vadd.f32 %v269, %v250
  %v271 = vadd.f32 %v270, %v251
  %v272 = vadd.f32 %v271, %v252
  %v273 = vadd.f32 %v272, %v253
  %v274 = vadd.f32 %v273, %v254
  %v275 = vadd.f32 %v274, %v255
  %v276 = vadd.f32 %v275, %v256
  %v277 = vadd.f32 %v276, %v257
  %v278 = vadd.f32 %v277, %v258
  %v279 = vadd.f32 %v278, %v259
  %v280 = vadd.f32 %v279, %v260
  %v281 = vrot.slane %v280, 4
  %v282 = vadd.f32 %v280, %v281
  %v283 = vrot.slane %v282, 2
  %v284 = vadd.f32 %v282, %v283
  %v285 = vrot.slane %v284, 1
  %v286 = vadd.f32 %v284, %v285
  %v287 = vmul.f32 %v286, 0.005952381
  %v288 = vmul.f32 %v239, %v239
  %v289 = vsub.f32 %v287, %v288
  %v290 = vadd.f32 %v289, 1e-05
  %v291 = vrsqrt.pop %v290
  %v292 = vmul.f32 %v291, %v290
  %v293 = vmul.f32 %v292, %v291
  %v294 = vmul.f32 0.5, %v293
  %v295 = vsub.f32 1.5, %v294
  %v296 = vmul.f32 %v291, %v295
  %vm297 = vweird.f32 %v290
  %vm298 = vweird.f32 %v291
  %vm299 = vmor %vm297, %vm298
  %v300 = vsel %vm299, %v291, %v296
  %v301 = vmul.f32 %v17, %v300
  %v302 = vmul.f32 %v239, %v301
  %v304 = vrot.slane %v302, 7
  %v306 = vsub.f32 %v17, %v304
  %v307 = vperm.slane %v301, 1
  %v308 = vmul.f32 %v192, %v307
  %v309 = vmul.f32 %v193, %v307
  %v310 = vmul.f32 %v194, %v307
  %v311 = vmul.f32 %v195, %v307
  %v312 = vmul.f32 %v196, %v307
  %v313 = vmul.f32 %v197, %v307
  %v314 = vmul.f32 %v198, %v307
  %v315 = vmul.f32 %v199, %v307
  %v316 = vmul.f32 %v200, %v307
  %v317 = vmul.f32 %v201, %v307
  %v318 = vmul.f32 %v202, %v307
  %v319 = vmul.f32 %v203, %v307
  %v320 = vmul.f32 %v204, %v307
  %v321 = vmul.f32 %v205, %v307
  %v322 = vmul.f32 %v206, %v307
  %v323 = vmul.f32 %v207, %v307
  %v324 = vmul.f32 %v208, %v307
  %v325 = vmul.f32 %v209, %v307
  %v326 = vmul.f32 %v210, %v307
  %v327 = vmul.f32 %v211, %v307
  %v328 = vmul.f32 %v212, %v307
  %v329 = vperm.slane %v306, 2
  %v330 = vadd.f32 %v308, %v329
  %v331 = vadd.f32 %v309, %v329
  %v332 = vadd.f32 %v310, %v329
  %v333 = vadd.f32 %v311, %v329
  %v334 = vadd.f32 %v312, %v329
  %v335 = vadd.f32 %v313, %v329
  %v336 = vadd.f32 %v314, %v329
  %v337 = vadd.f32 %v315, %v329
  %v338 = vadd.f32 %v316, %v329
  %v339 = vadd.f32 %v317, %v329
  %v340 = vadd.f32 %v318, %v329
  %v341 = vadd.f32 %v319, %v329
  %v342 = vadd.f32 %v320, %v329
  %v343 = vadd.f32 %v321, %v329
  %v344 = vadd.f32 %v322, %v329
  %v345 = vadd.f32 %v323, %v329
  %v346 = vadd.f32 %v324, %v329
  %v347 = vadd.f32 %v325, %v329
  %v348 = vadd.f32 %v326, %v329
  %v349 = vadd.f32 %v327, %v329
  %v350 = vadd.f32 %v328, %v329
  %v351 = vld [vmem:[%s2] sm:$0xff]
  %v352 = vld [vmem:[%s2 + $0x8] sm:$0xff]
  %v353 = vld [vmem:[%s2 + $0x10] sm:$0xff]
  %v354 = vld [vmem:[%s2 + $0x18] sm:$0xff]
  %v355 = vld [vmem:[%s2 + $0x20] sm:$0xff]
  %v356 = vld [vmem:[%s2 + $0x28] sm:$0xff]
  %v357 = vld [vmem:[%s2 + $0x30] sm:$0xff]
  %v358 = vld [vmem:[%s2 + $0x38] sm:$0xff]
  %v359 = vld [vmem:[%s2 + $0x40] sm:$0xff]
  %v360 = vld [vmem:[%s2 + $0x48] sm:$0xff]
  %v361 = vld [vmem:[%s2 + $0x50] sm:$0xff]
  %v362 = vld [vmem:[%s2 + $0x58] sm:$0xff]
  %v363 = vld [vmem:[%s2 + $0x60] sm:$0xff]
  %v364 = vld [vmem:[%s2 + $0x68] sm:$0xff]
  %v365 = vld [vmem:[%s2 + $0x70] sm:$0xff]
  %v366 = vld [vmem:[%s2 + $0x78] sm:$0xff]
  %v367 = vperm.slane %v17, 3
  %368 = vmatpush.msra.mxu0 %v366
  %369 = vmatpush.msra.mxu0 %v365
  %370 = vmatpush.msra.mxu0 %v364
  %371 = vmatpush.msra.mxu0 %v363
  %372 = vmatpush.msra.mxu0 %v362
  %373 = vmatpush.msra.mxu0 %v361
  %374 = vmatpush.msra.mxu0 %v360
  %375 = vmatpush.msra.mxu0 %v359
  %376 = vmatpush.msra.mxu0 %v358
  %377 = vmatpush.msra.mxu0 %v357
  %378 = vmatpush.msra.mxu0 %v356
  %379 = vmatpush.msra.mxu0 %v355
  %380 = vmatpush.msra.mxu0 %v354
  %381 = vmatpush.msra.mxu0 %v353
  %382 = vmatpush.msra.mxu0 %v352
  %383 = vmatpush.msra.mxu0 %v351
  %384 = vmatmul.f32.gmra.mxu0 %v330
  %v385 = vpop.f32.mrf.mxu0
  %v386 = vadd.f32 %v367, %v385
  %387 = vmatmul.f32.gmra.mxu0 %v331
  %v388 = vpop.f32.mrf.mxu0
  %v389 = vadd.f32 %v367, %v388
  %390 = vmatmul.f32.gmra.mxu0 %v332
  %v391 = vpop.f32.mrf.mxu0
  %v392 = vadd.f32 %v367, %v391
  %393 = vmatmul.f32.gmra.mxu0 %v333
  %v394 = vpop.f32.mrf.mxu0
  %v395 = vadd.f32 %v367, %v394
  %396 = vmatmul.f32.gmra.mxu0 %v334
  %v397 = vpop.f32.mrf.mxu0
  %v398 = vadd.f32 %v367, %v397
  %399 = vmatmul.f32.gmra.mxu0 %v335
  %v400 = vpop.f32.mrf.mxu0
  %v401 = vadd.f32 %v367, %v400
  %402 = vmatmul.f32.gmra.mxu0 %v336
  %v403 = vpop.f32.mrf.mxu0
  %v404 = vadd.f32 %v367, %v403
  %405 = vmatmul.f32.gmra.mxu0 %v337
  %v406 = vpop.f32.mrf.mxu0
  %v407 = vadd.f32 %v367, %v406
  %408 = vmatmul.f32.gmra.mxu0 %v338
  %v409 = vpop.f32.mrf.mxu0
  %v410 = vadd.f32 %v367, %v409
  %411 = vmatmul.f32.gmra.mxu0 %v339
  %v412 = vpop.f32.mrf.mxu0
  %v413 = vadd.f32 %v367, %v412
  %414 = vmatmul.f32.gmra.mxu0 %v340
  %v415 = vpop.f32.mrf.mxu0
  %v416 = vadd.f32 %v367, %v415
  %417 = vmatmul.f32.gmra.mxu0 %v341
  %v418 = vpop.f32.mrf.mxu0
  %v419 = vadd.f32 %v367, %v418
  %420 = vmatmul.f32.gmra.mxu0 %v342
  %v421 = vpop.f32.mrf.mxu0
  %v422 = vadd.f32 %v367, %v421
  %423 = vmatmul.f32.gmra.mxu0 %v343
  %v424 = vpop.f32.mrf.mxu0
  %v425 = vadd.f32 %v367, %v424
  %426 = vmatmul.f32.gmra.mxu0 %v344
  %v427 = vpop.f32.mrf.mxu0
  %v428 = vadd.f32 %v367, %v427
  %429 = vmatmul.f32.gmra.mxu0 %v345
  %v430 = vpop.f32.mrf.mxu0
  %v431 = vadd.f32 %v367, %v430
  %432 = vmatmul.f32.gmra.mxu0 %v346
  %v433 = vpop.f32.mrf.mxu0
  %v434 = vadd.f32 %v367, %v433
  %435 = vmatmul.f32.gmra.mxu0 %v347
  %v436 = vpop.f32.mrf.mxu0
  %v437 = vadd.f32 %v367, %v436
  %438 = vmatmul.f32.gmra.mxu0 %v348
  %v439 = vpop.f32.mrf.mxu0
  %v440 = vadd.f32 %v367, %v439
  %441 = vmatmul.f32.gmra.mxu0 %v349
  %v442 = vpop.f32.mrf.mxu0
  %v443 = vadd.f32 %v367, %v442
  %444 = vmatmul.f32.gmra.mxu0 %v350
  %v445 = vpop.f32.mrf.mxu0
  %v446 = vadd.f32 %v367, %v445
  %447 = vdwg.mxu0
  %v448 = vlaneseq
  %v449 = vand.u32 %v448, 127
  %vm450 = vcmp.lt.s32.totalorder %v449, 10
  %v451 = vsel %vm450, %v386, -1e+30
  %v452 = vsel %vm450, %v389, -1e+30
  %v453 = vsel %vm450, %v392, -1e+30
  %v454 = vsel %vm450, %v395, -1e+30
  %v455 = vsel %vm450, %v398, -1e+30
  %v456 = vsel %vm450, %v401, -1e+30
  %v457 = vsel %vm450, %v404, -1e+30
  %v458 = vsel %vm450, %v407, -1e+30
  %v459 = vsel %vm450, %v410, -1e+30
  %v460 = vsel %vm450, %v413, -1e+30
  %v461 = vsel %vm450, %v416, -1e+30
  %v462 = vsel %vm450, %v419, -1e+30
  %v463 = vsel %vm450, %v422, -1e+30
  %v464 = vsel %vm450, %v425, -1e+30
  %v465 = vsel %vm450, %v428, -1e+30
  %v466 = vsel %vm450, %v431, -1e+30
  %v467 = vsel %vm450, %v434, -1e+30
  %v468 = vsel %vm450, %v437, -1e+30
  %v469 = vsel %vm450, %v440, -1e+30
  %v470 = vsel %vm450, %v443, -1e+30
  %v471 = vsel %vm450, %v446, -1e+30
  %472 = vmax.xlane.f32.xlu0 %v451
  %v473 = vpop.xlane.xlu0 %472
  %474 = vmax.xlane.f32.xlu0 %v452
  %v475 = vpop.xlane.xlu0 %474
  %476 = vmax.xlane.f32.xlu0 %v453
  %v477 = vpop.xlane.xlu0 %476
  %478 = vmax.xlane.f32.xlu0 %v454
  %v479 = vpop.xlane.xlu0 %478
  %480 = vmax.xlane.f32.xlu0 %v455
  %v481 = vpop.xlane.xlu0 %480
  %482 = vmax.xlane.f32.xlu0 %v456
  %v483 = vpop.xlane.xlu0 %482
  %484 = vmax.xlane.f32.xlu0 %v457
  %v485 = vpop.xlane.xlu0 %484
  %486 = vmax.xlane.f32.xlu0 %v458
  %v487 = vpop.xlane.xlu0 %486
  %488 = vmax.xlane.f32.xlu0 %v459
  %v489 = vpop.xlane.xlu0 %488
  %490 = vmax.xlane.f32.xlu0 %v460
  %v491 = vpop.xlane.xlu0 %490
  %492 = vmax.xlane.f32.xlu0 %v461
  %v493 = vpop.xlane.xlu0 %492
  %494 = vmax.xlane.f32.xlu0 %v462
  %v495 = vpop.xlane.xlu0 %494
  %496 = vmax.xlane.f32.xlu0 %v463
  %v497 = vpop.xlane.xlu0 %496
  %498 = vmax.xlane.f32.xlu0 %v464
  %v499 = vpop.xlane.xlu0 %498
  %500 = vmax.xlane.f32.xlu0 %v465
  %v501 = vpop.xlane.xlu0 %500
  %502 = vmax.xlane.f32.xlu0 %v466
  %v503 = vpop.xlane.xlu0 %502
  %504 = vmax.xlane.f32.xlu0 %v467
  %v505 = vpop.xlane.xlu0 %504
  %506 = vmax.xlane.f32.xlu0 %v468
  %v507 = vpop.xlane.xlu0 %506
  %508 = vmax.xlane.f32.xlu0 %v469
  %v509 = vpop.xlane.xlu0 %508
  %510 = vmax.xlane.f32.xlu0 %v470
  %v511 = vpop.xlane.xlu0 %510
  %512 = vmax.xlane.f32.xlu0 %v471
  %v513 = vpop.xlane.xlu0 %512
  %v514 = vsub.f32 %v451, %v473
  %v515 = vsub.f32 %v452, %v475
  %v516 = vsub.f32 %v453, %v477
  %v517 = vsub.f32 %v454, %v479
  %v518 = vsub.f32 %v455, %v481
  %v519 = vsub.f32 %v456, %v483
  %v520 = vsub.f32 %v457, %v485
  %v521 = vsub.f32 %v458, %v487
  %v522 = vsub.f32 %v459, %v489
  %v523 = vsub.f32 %v460, %v491
  %v524 = vsub.f32 %v461, %v493
  %v525 = vsub.f32 %v462, %v495
  %v526 = vsub.f32 %v463, %v497
  %v527 = vsub.f32 %v464, %v499
  %v528 = vsub.f32 %v465, %v501
  %v529 = vsub.f32 %v466, %v503
  %v530 = vsub.f32 %v467, %v505
  %v531 = vsub.f32 %v468, %v507
  %v532 = vsub.f32 %v469, %v509
  %v533 = vsub.f32 %v470, %v511
  %v534 = vsub.f32 %v471, %v513
  %v535 = vmul.f32 %v514, 1.442695
  %v536 = vpow.pop %v535
  %v537 = vmul.f32 %v515, 1.442695
  %v538 = vpow.pop %v537
  %v539 = vmul.f32 %v516, 1.442695
  %v540 = vpow.pop %v539
  %v541 = vmul.f32 %v517, 1.442695
  %v542 = vpow.pop %v541
  %v543 = vmul.f32 %v518, 1.442695
  %v544 = vpow.pop %v543
  %v545 = vmul.f32 %v519, 1.442695
  %v546 = vpow.pop %v545
  %v547 = vmul.f32 %v520, 1.442695
  %v548 = vpow.pop %v547
  %v549 = vmul.f32 %v521, 1.442695
  %v550 = vpow.pop %v549
  %v551 = vmul.f32 %v522, 1.442695
  %v552 = vpow.pop %v551
  %v553 = vmul.f32 %v523, 1.442695
  %v554 = vpow.pop %v553
  %v555 = vmul.f32 %v524, 1.442695
  %v556 = vpow.pop %v555
  %v557 = vmul.f32 %v525, 1.442695
  %v558 = vpow.pop %v557
  %v559 = vmul.f32 %v526, 1.442695
  %v560 = vpow.pop %v559
  %v561 = vmul.f32 %v527, 1.442695
  %v562 = vpow.pop %v561
  %v563 = vmul.f32 %v528, 1.442695
  %v564 = vpow.pop %v563
  %v565 = vmul.f32 %v529, 1.442695
  %v566 = vpow.pop %v565
  %v567 = vmul.f32 %v530, 1.442695
  %v568 = vpow.pop %v567
  %v569 = vmul.f32 %v531, 1.442695
  %v570 = vpow.pop %v569
  %v571 = vmul.f32 %v532, 1.442695
  %v572 = vpow.pop %v571
  %v573 = vmul.f32 %v533, 1.442695
  %v574 = vpow.pop %v573
  %v575 = vmul.f32 %v534, 1.442695
  %v576 = vpow.pop %v575
  %v577 = vsel %vm450, %v536, 0.0
  %v578 = vsel %vm450, %v538, 0.0
  %v579 = vsel %vm450, %v540, 0.0
  %v580 = vsel %vm450, %v542, 0.0
  %v581 = vsel %vm450, %v544, 0.0
  %v582 = vsel %vm450, %v546, 0.0
  %v583 = vsel %vm450, %v548, 0.0
  %v584 = vsel %vm450, %v550, 0.0
  %v585 = vsel %vm450, %v552, 0.0
  %v586 = vsel %vm450, %v554, 0.0
  %v587 = vsel %vm450, %v556, 0.0
  %v588 = vsel %vm450, %v558, 0.0
  %v589 = vsel %vm450, %v560, 0.0
  %v590 = vsel %vm450, %v562, 0.0
  %v591 = vsel %vm450, %v564, 0.0
  %v592 = vsel %vm450, %v566, 0.0
  %v593 = vsel %vm450, %v568, 0.0
  %v594 = vsel %vm450, %v570, 0.0
  %v595 = vsel %vm450, %v572, 0.0
  %v596 = vsel %vm450, %v574, 0.0
  %v597 = vsel %vm450, %v576, 0.0
  %598 = vadd.xlane.f32.xlu0 %v577
  %v599 = vpop.xlane.xlu0 %598
  %600 = vadd.xlane.f32.xlu0 %v578
  %v601 = vpop.xlane.xlu0 %600
  %602 = vadd.xlane.f32.xlu0 %v579
  %v603 = vpop.xlane.xlu0 %602
  %604 = vadd.xlane.f32.xlu0 %v580
  %v605 = vpop.xlane.xlu0 %604
  %606 = vadd.xlane.f32.xlu0 %v581
  %v607 = vpop.xlane.xlu0 %606
  %608 = vadd.xlane.f32.xlu0 %v582
  %v609 = vpop.xlane.xlu0 %608
  %610 = vadd.xlane.f32.xlu0 %v583
  %v611 = vpop.xlane.xlu0 %610
  %612 = vadd.xlane.f32.xlu0 %v584
  %v613 = vpop.xlane.xlu0 %612
  %614 = vadd.xlane.f32.xlu0 %v585
  %v615 = vpop.xlane.xlu0 %614
  %616 = vadd.xlane.f32.xlu0 %v586
  %v617 = vpop.xlane.xlu0 %616
  %618 = vadd.xlane.f32.xlu0 %v587
  %v619 = vpop.xlane.xlu0 %618
  %620 = vadd.xlane.f32.xlu0 %v588
  %v621 = vpop.xlane.xlu0 %620
  %622 = vadd.xlane.f32.xlu0 %v589
  %v623 = vpop.xlane.xlu0 %622
  %624 = vadd.xlane.f32.xlu0 %v590
  %v625 = vpop.xlane.xlu0 %624
  %626 = vadd.xlane.f32.xlu0 %v591
  %v627 = vpop.xlane.xlu0 %626
  %628 = vadd.xlane.f32.xlu0 %v592
  %v629 = vpop.xlane.xlu0 %628
  %630 = vadd.xlane.f32.xlu0 %v593
  %v631 = vpop.xlane.xlu0 %630
  %632 = vadd.xlane.f32.xlu0 %v594
  %v633 = vpop.xlane.xlu0 %632
  %634 = vadd.xlane.f32.xlu0 %v595
  %v635 = vpop.xlane.xlu0 %634
  %636 = vadd.xlane.f32.xlu0 %v596
  %v637 = vpop.xlane.xlu0 %636
  %638 = vadd.xlane.f32.xlu0 %v597
  %v639 = vpop.xlane.xlu0 %638
  %v640 = vrcp.pop %v599
  %v641 = vmul.f32 %v599, %v640
  %v642 = vsub.f32 1.0, %v641
  %v643 = vmul.f32 %v640, %v642
  %v644 = vadd.f32 %v640, %v643
  %vm645 = vweird.f32 %v599
  %vm646 = vweird.f32 %v640
  %vm647 = vmor %vm645, %vm646
  %v648 = vsel %vm647, %v640, %v644
  %v649 = vand.u32 2147483647, %v599
  %vm650 = vcmp.eq.f32.partialorder %v649, 8.507059e+37
  %v651 = vand.u32 %v599, 2147483648
  %v652 = vor.u32 1.1754944e-38, %v651
  %v653 = vsel %vm650, %v652, %v648
  %v654 = vmul.f32 1.0, %v653
  %v655 = vrcp.pop %v601
  %v656 = vmul.f32 %v601, %v655
  %v657 = vsub.f32 1.0, %v656
  %v658 = vmul.f32 %v655, %v657
  %v659 = vadd.f32 %v655, %v658
  %vm660 = vweird.f32 %v601
  %vm661 = vweird.f32 %v655
  %vm662 = vmor %vm660, %vm661
  %v663 = vsel %vm662, %v655, %v659
  %v664 = vand.u32 2147483647, %v601
  %vm665 = vcmp.eq.f32.partialorder %v664, 8.507059e+37
  %v666 = vand.u32 %v601, 2147483648
  %v667 = vor.u32 1.1754944e-38, %v666
  %v668 = vsel %vm665, %v667, %v663
  %v669 = vmul.f32 1.0, %v668
  %v670 = vrcp.pop %v603
  %v671 = vmul.f32 %v603, %v670
  %v672 = vsub.f32 1.0, %v671
  %v673 = vmul.f32 %v670, %v672
  %v674 = vadd.f32 %v670, %v673
  %vm675 = vweird.f32 %v603
  %vm676 = vweird.f32 %v670
  %vm677 = vmor %vm675, %vm676
  %v678 = vsel %vm677, %v670, %v674
  %v679 = vand.u32 2147483647, %v603
  %vm680 = vcmp.eq.f32.partialorder %v679, 8.507059e+37
  %v681 = vand.u32 %v603, 2147483648
  %v682 = vor.u32 1.1754944e-38, %v681
  %v683 = vsel %vm680, %v682, %v678
  %v684 = vmul.f32 1.0, %v683
  %v685 = vrcp.pop %v605
  %v686 = vmul.f32 %v605, %v685
  %v687 = vsub.f32 1.0, %v686
  %v688 = vmul.f32 %v685, %v687
  %v689 = vadd.f32 %v685, %v688
  %vm690 = vweird.f32 %v605
  %vm691 = vweird.f32 %v685
  %vm692 = vmor %vm690, %vm691
  %v693 = vsel %vm692, %v685, %v689
  %v694 = vand.u32 2147483647, %v605
  %vm695 = vcmp.eq.f32.partialorder %v694, 8.507059e+37
  %v696 = vand.u32 %v605, 2147483648
  %v697 = vor.u32 1.1754944e-38, %v696
  %v698 = vsel %vm695, %v697, %v693
  %v699 = vmul.f32 1.0, %v698
  %v700 = vrcp.pop %v607
  %v701 = vmul.f32 %v607, %v700
  %v702 = vsub.f32 1.0, %v701
  %v703 = vmul.f32 %v700, %v702
  %v704 = vadd.f32 %v700, %v703
  %vm705 = vweird.f32 %v607
  %vm706 = vweird.f32 %v700
  %vm707 = vmor %vm705, %vm706
  %v708 = vsel %vm707, %v700, %v704
  %v709 = vand.u32 2147483647, %v607
  %vm710 = vcmp.eq.f32.partialorder %v709, 8.507059e+37
  %v711 = vand.u32 %v607, 2147483648
  %v712 = vor.u32 1.1754944e-38, %v711
  %v713 = vsel %vm710, %v712, %v708
  %v714 = vmul.f32 1.0, %v713
  %v715 = vrcp.pop %v609
  %v716 = vmul.f32 %v609, %v715
  %v717 = vsub.f32 1.0, %v716
  %v718 = vmul.f32 %v715, %v717
  %v719 = vadd.f32 %v715, %v718
  %vm720 = vweird.f32 %v609
  %vm721 = vweird.f32 %v715
  %vm722 = vmor %vm720, %vm721
  %v723 = vsel %vm722, %v715, %v719
  %v724 = vand.u32 2147483647, %v609
  %vm725 = vcmp.eq.f32.partialorder %v724, 8.507059e+37
  %v726 = vand.u32 %v609, 2147483648
  %v727 = vor.u32 1.1754944e-38, %v726
  %v728 = vsel %vm725, %v727, %v723
  %v729 = vmul.f32 1.0, %v728
  %v730 = vrcp.pop %v611
  %v731 = vmul.f32 %v611, %v730
  %v732 = vsub.f32 1.0, %v731
  %v733 = vmul.f32 %v730, %v732
  %v734 = vadd.f32 %v730, %v733
  %vm735 = vweird.f32 %v611
  %vm736 = vweird.f32 %v730
  %vm737 = vmor %vm735, %vm736
  %v738 = vsel %vm737, %v730, %v734
  %v739 = vand.u32 2147483647, %v611
  %vm740 = vcmp.eq.f32.partialorder %v739, 8.507059e+37
  %v741 = vand.u32 %v611, 2147483648
  %v742 = vor.u32 1.1754944e-38, %v741
  %v743 = vsel %vm740, %v742, %v738
  %v744 = vmul.f32 1.0, %v743
  %v745 = vrcp.pop %v613
  %v746 = vmul.f32 %v613, %v745
  %v747 = vsub.f32 1.0, %v746
  %v748 = vmul.f32 %v745, %v747
  %v749 = vadd.f32 %v745, %v748
  %vm750 = vweird.f32 %v613
  %vm751 = vweird.f32 %v745
  %vm752 = vmor %vm750, %vm751
  %v753 = vsel %vm752, %v745, %v749
  %v754 = vand.u32 2147483647, %v613
  %vm755 = vcmp.eq.f32.partialorder %v754, 8.507059e+37
  %v756 = vand.u32 %v613, 2147483648
  %v757 = vor.u32 1.1754944e-38, %v756
  %v758 = vsel %vm755, %v757, %v753
  %v759 = vmul.f32 1.0, %v758
  %v760 = vrcp.pop %v615
  %v761 = vmul.f32 %v615, %v760
  %v762 = vsub.f32 1.0, %v761
  %v763 = vmul.f32 %v760, %v762
  %v764 = vadd.f32 %v760, %v763
  %vm765 = vweird.f32 %v615
  %vm766 = vweird.f32 %v760
  %vm767 = vmor %vm765, %vm766
  %v768 = vsel %vm767, %v760, %v764
  %v769 = vand.u32 2147483647, %v615
  %vm770 = vcmp.eq.f32.partialorder %v769, 8.507059e+37
  %v771 = vand.u32 %v615, 2147483648
  %v772 = vor.u32 1.1754944e-38, %v771
  %v773 = vsel %vm770, %v772, %v768
  %v774 = vmul.f32 1.0, %v773
  %v775 = vrcp.pop %v617
  %v776 = vmul.f32 %v617, %v775
  %v777 = vsub.f32 1.0, %v776
  %v778 = vmul.f32 %v775, %v777
  %v779 = vadd.f32 %v775, %v778
  %vm780 = vweird.f32 %v617
  %vm781 = vweird.f32 %v775
  %vm782 = vmor %vm780, %vm781
  %v783 = vsel %vm782, %v775, %v779
  %v784 = vand.u32 2147483647, %v617
  %vm785 = vcmp.eq.f32.partialorder %v784, 8.507059e+37
  %v786 = vand.u32 %v617, 2147483648
  %v787 = vor.u32 1.1754944e-38, %v786
  %v788 = vsel %vm785, %v787, %v783
  %v789 = vmul.f32 1.0, %v788
  %v790 = vrcp.pop %v619
  %v791 = vmul.f32 %v619, %v790
  %v792 = vsub.f32 1.0, %v791
  %v793 = vmul.f32 %v790, %v792
  %v794 = vadd.f32 %v790, %v793
  %vm795 = vweird.f32 %v619
  %vm796 = vweird.f32 %v790
  %vm797 = vmor %vm795, %vm796
  %v798 = vsel %vm797, %v790, %v794
  %v799 = vand.u32 2147483647, %v619
  %vm800 = vcmp.eq.f32.partialorder %v799, 8.507059e+37
  %v801 = vand.u32 %v619, 2147483648
  %v802 = vor.u32 1.1754944e-38, %v801
  %v803 = vsel %vm800, %v802, %v798
  %v804 = vmul.f32 1.0, %v803
  %v805 = vrcp.pop %v621
  %v806 = vmul.f32 %v621, %v805
  %v807 = vsub.f32 1.0, %v806
  %v808 = vmul.f32 %v805, %v807
  %v809 = vadd.f32 %v805, %v808
  %vm810 = vweird.f32 %v621
  %vm811 = vweird.f32 %v805
  %vm812 = vmor %vm810, %vm811
  %v813 = vsel %vm812, %v805, %v809
  %v814 = vand.u32 2147483647, %v621
  %vm815 = vcmp.eq.f32.partialorder %v814, 8.507059e+37
  %v816 = vand.u32 %v621, 2147483648
  %v817 = vor.u32 1.1754944e-38, %v816
  %v818 = vsel %vm815, %v817, %v813
  %v819 = vmul.f32 1.0, %v818
  %v820 = vrcp.pop %v623
  %v821 = vmul.f32 %v623, %v820
  %v822 = vsub.f32 1.0, %v821
  %v823 = vmul.f32 %v820, %v822
  %v824 = vadd.f32 %v820, %v823
  %vm825 = vweird.f32 %v623
  %vm826 = vweird.f32 %v820
  %vm827 = vmor %vm825, %vm826
  %v828 = vsel %vm827, %v820, %v824
  %v829 = vand.u32 2147483647, %v623
  %vm830 = vcmp.eq.f32.partialorder %v829, 8.507059e+37
  %v831 = vand.u32 %v623, 2147483648
  %v832 = vor.u32 1.1754944e-38, %v831
  %v833 = vsel %vm830, %v832, %v828
  %v834 = vmul.f32 1.0, %v833
  %v835 = vrcp.pop %v625
  %v836 = vmul.f32 %v625, %v835
  %v837 = vsub.f32 1.0, %v836
  %v838 = vmul.f32 %v835, %v837
  %v839 = vadd.f32 %v835, %v838
  %vm840 = vweird.f32 %v625
  %vm841 = vweird.f32 %v835
  %vm842 = vmor %vm840, %vm841
  %v843 = vsel %vm842, %v835, %v839
  %v844 = vand.u32 2147483647, %v625
  %vm845 = vcmp.eq.f32.partialorder %v844, 8.507059e+37
  %v846 = vand.u32 %v625, 2147483648
  %v847 = vor.u32 1.1754944e-38, %v846
  %v848 = vsel %vm845, %v847, %v843
  %v849 = vmul.f32 1.0, %v848
  %v850 = vrcp.pop %v627
  %v851 = vmul.f32 %v627, %v850
  %v852 = vsub.f32 1.0, %v851
  %v853 = vmul.f32 %v850, %v852
  %v854 = vadd.f32 %v850, %v853
  %vm855 = vweird.f32 %v627
  %vm856 = vweird.f32 %v850
  %vm857 = vmor %vm855, %vm856
  %v858 = vsel %vm857, %v850, %v854
  %v859 = vand.u32 2147483647, %v627
  %vm860 = vcmp.eq.f32.partialorder %v859, 8.507059e+37
  %v861 = vand.u32 %v627, 2147483648
  %v862 = vor.u32 1.1754944e-38, %v861
  %v863 = vsel %vm860, %v862, %v858
  %v864 = vmul.f32 1.0, %v863
  %v865 = vrcp.pop %v629
  %v866 = vmul.f32 %v629, %v865
  %v867 = vsub.f32 1.0, %v866
  %v868 = vmul.f32 %v865, %v867
  %v869 = vadd.f32 %v865, %v868
  %vm870 = vweird.f32 %v629
  %vm871 = vweird.f32 %v865
  %vm872 = vmor %vm870, %vm871
  %v873 = vsel %vm872, %v865, %v869
  %v874 = vand.u32 2147483647, %v629
  %vm875 = vcmp.eq.f32.partialorder %v874, 8.507059e+37
  %v876 = vand.u32 %v629, 2147483648
  %v877 = vor.u32 1.1754944e-38, %v876
  %v878 = vsel %vm875, %v877, %v873
  %v879 = vmul.f32 1.0, %v878
  %v880 = vrcp.pop %v631
  %v881 = vmul.f32 %v631, %v880
  %v882 = vsub.f32 1.0, %v881
  %v883 = vmul.f32 %v880, %v882
  %v884 = vadd.f32 %v880, %v883
  %vm885 = vweird.f32 %v631
  %vm886 = vweird.f32 %v880
  %vm887 = vmor %vm885, %vm886
  %v888 = vsel %vm887, %v880, %v884
  %v889 = vand.u32 2147483647, %v631
  %vm890 = vcmp.eq.f32.partialorder %v889, 8.507059e+37
  %v891 = vand.u32 %v631, 2147483648
  %v892 = vor.u32 1.1754944e-38, %v891
  %v893 = vsel %vm890, %v892, %v888
  %v894 = vmul.f32 1.0, %v893
  %v895 = vrcp.pop %v633
  %v896 = vmul.f32 %v633, %v895
  %v897 = vsub.f32 1.0, %v896
  %v898 = vmul.f32 %v895, %v897
  %v899 = vadd.f32 %v895, %v898
  %vm900 = vweird.f32 %v633
  %vm901 = vweird.f32 %v895
  %vm902 = vmor %vm900, %vm901
  %v903 = vsel %vm902, %v895, %v899
  %v904 = vand.u32 2147483647, %v633
  %vm905 = vcmp.eq.f32.partialorder %v904, 8.507059e+37
  %v906 = vand.u32 %v633, 2147483648
  %v907 = vor.u32 1.1754944e-38, %v906
  %v908 = vsel %vm905, %v907, %v903
  %v909 = vmul.f32 1.0, %v908
  %v910 = vrcp.pop %v635
  %v911 = vmul.f32 %v635, %v910
  %v912 = vsub.f32 1.0, %v911
  %v913 = vmul.f32 %v910, %v912
  %v914 = vadd.f32 %v910, %v913
  %vm915 = vweird.f32 %v635
  %vm916 = vweird.f32 %v910
  %vm917 = vmor %vm915, %vm916
  %v918 = vsel %vm917, %v910, %v914
  %v919 = vand.u32 2147483647, %v635
  %vm920 = vcmp.eq.f32.partialorder %v919, 8.507059e+37
  %v921 = vand.u32 %v635, 2147483648
  %v922 = vor.u32 1.1754944e-38, %v921
  %v923 = vsel %vm920, %v922, %v918
  %v924 = vmul.f32 1.0, %v923
  %v925 = vrcp.pop %v637
  %v926 = vmul.f32 %v637, %v925
  %v927 = vsub.f32 1.0, %v926
  %v928 = vmul.f32 %v925, %v927
  %v929 = vadd.f32 %v925, %v928
  %vm930 = vweird.f32 %v637
  %vm931 = vweird.f32 %v925
  %vm932 = vmor %vm930, %vm931
  %v933 = vsel %vm932, %v925, %v929
  %v934 = vand.u32 2147483647, %v637
  %vm935 = vcmp.eq.f32.partialorder %v934, 8.507059e+37
  %v936 = vand.u32 %v637, 2147483648
  %v937 = vor.u32 1.1754944e-38, %v936
  %v938 = vsel %vm935, %v937, %v933
  %v939 = vmul.f32 1.0, %v938
  %v940 = vrcp.pop %v639
  %v941 = vmul.f32 %v639, %v940
  %v942 = vsub.f32 1.0, %v941
  %v943 = vmul.f32 %v940, %v942
  %v944 = vadd.f32 %v940, %v943
  %vm945 = vweird.f32 %v639
  %vm946 = vweird.f32 %v940
  %vm947 = vmor %vm945, %vm946
  %v948 = vsel %vm947, %v940, %v944
  %v949 = vand.u32 2147483647, %v639
  %vm950 = vcmp.eq.f32.partialorder %v949, 8.507059e+37
  %v951 = vand.u32 %v639, 2147483648
  %v952 = vor.u32 1.1754944e-38, %v951
  %v953 = vsel %vm950, %v952, %v948
  %v954 = vmul.f32 1.0, %v953
  %v955 = vmul.f32 %v577, %v654
  %v956 = vmul.f32 %v578, %v669
  %v957 = vmul.f32 %v579, %v684
  %v958 = vmul.f32 %v580, %v699
  %v959 = vmul.f32 %v581, %v714
  %v960 = vmul.f32 %v582, %v729
  %v961 = vmul.f32 %v583, %v744
  %v962 = vmul.f32 %v584, %v759
  %v963 = vmul.f32 %v585, %v774
  %v964 = vmul.f32 %v586, %v789
  %v965 = vmul.f32 %v587, %v804
  %v966 = vmul.f32 %v588, %v819
  %v967 = vmul.f32 %v589, %v834
  %v968 = vmul.f32 %v590, %v849
  %v969 = vmul.f32 %v591, %v864
  %v970 = vmul.f32 %v592, %v879
  %v971 = vmul.f32 %v593, %v894
  %v972 = vmul.f32 %v594, %v909
  %v973 = vmul.f32 %v595, %v924
  %v974 = vmul.f32 %v596, %v939
  %v975 = vmul.f32 %v597, %v954
  %976 = vst [vmem:[%s4] sm:$0xff] %v955
  %977 = vst [vmem:[%s4 + $0x8] sm:$0xff] %v956
  %978 = vst [vmem:[%s4 + $0x10] sm:$0xff] %v957
  %979 = vst [vmem:[%s4 + $0x18] sm:$0xff] %v958
  %980 = vst [vmem:[%s4 + $0x20] sm:$0xff] %v959
  %981 = vst [vmem:[%s4 + $0x28] sm:$0xff] %v960
  %982 = vst [vmem:[%s4 + $0x30] sm:$0xff] %v961
  %983 = vst [vmem:[%s4 + $0x38] sm:$0xff] %v962
  %984 = vst [vmem:[%s4 + $0x40] sm:$0xff] %v963
  %985 = vst [vmem:[%s4 + $0x48] sm:$0xff] %v964
  %986 = vst [vmem:[%s4 + $0x50] sm:$0xff] %v965
  %987 = vst [vmem:[%s4 + $0x58] sm:$0xff] %v966
  %988 = vst [vmem:[%s4 + $0x60] sm:$0xff] %v967
  %989 = vst [vmem:[%s4 + $0x68] sm:$0xff] %v968
  %990 = vst [vmem:[%s4 + $0x70] sm:$0xff] %v969
  %991 = vst [vmem:[%s4 + $0x78] sm:$0xff] %v970
  %992 = vst [vmem:[%s4 + $0x80] sm:$0xff] %v971
  %993 = vst [vmem:[%s4 + $0x88] sm:$0xff] %v972
  %994 = vst [vmem:[%s4 + $0x90] sm:$0xff] %v973
  %995 = vst [vmem:[%s4 + $0x98] sm:$0xff] %v974
  %996 = vst [vmem:[%s4 + $0xa0] sm:$0xff] %v975
  // Predicated region
  $region18: #{custom_model_forward.1} parent=0 // pred_check
    _
  $region19: #{custom_model_forward.1} parent=0 // pred_check_branch
    %998 = sbr.rel (0) target = $region21
  $region20: #{custom_model_forward.1} parent=0 // pred_region
    _
  $region21: #{custom_model_forward.1} parent=0 // pred_fallthru
    _
  // Predicated region
  $region22: #{custom_model_forward.1} parent=0 // pred_check
    _
  $region23: #{custom_model_forward.1} parent=0 // pred_check_branch
    %1000 = sbr.rel (0) target = $region25
  $region24: #{custom_model_forward.1} parent=0 // pred_region
    _
  $region25: #{custom_model_forward.1} parent=0 // pred_fallthru
    _

</llo_original>
